<compile_context>
chip_gen: v6e
topology: v6e:2x2x1
jax: 0.10.0
libtpu: 0.0.40
codegen_flags: <defaults>
</compile_context>

<pallas_src>
import functools

import jax
import jax.numpy as jnp
import numpy as np
from jax.experimental import pallas as pl
from jax.experimental.pallas import tpu as pltpu


# ------------------------------ Pallas kernel -------------------------------

def _fused_cnn_kernel(x_ref, t1_ref, b1_ref, t2_ref, b2_ref,
                      w3_ref, b3_ref, w4_ref, b4_ref, o_ref,
                      *, neg_slope, pool_groups, pool_width):
    """Whole CNN forward for one batch block; everything stays on-chip."""
    x = x_ref[0].astype(jnp.bfloat16)                       # (BB, H*W)

    # conv1: reflect-pad + conv(stride 2) + BN scale folded into t1.
    h1 = jnp.dot(x, t1_ref[...], preferred_element_type=jnp.float32)
    h1 = h1 + b1_ref[...]                                   # BN bias
    h1 = jnp.where(h1 >= 0, h1, neg_slope * h1)             # LeakyReLU(0.2)

    # conv2: reflect-pad + conv(stride 2) + BN scale folded into t2.
    h2 = jnp.dot(h1.astype(jnp.bfloat16), t2_ref[...],
                 preferred_element_type=jnp.float32)
    h2 = h2 + b2_ref[...]                                   # BN bias

    # AdaptiveMaxPool2d((2, 2)): t2's columns are grouped so the pool is a max
    # over `pool_groups` contiguous lane slices; the pooled column order is
    # already PyTorch's NCHW x.view(B, -1) order.
    pooled = h2[:, 0:pool_width]
    for g in range(1, pool_groups):
        pooled = jnp.maximum(pooled,
                             h2[:, g * pool_width:(g + 1) * pool_width])

    # FC head: Linear -> ReLU -> (Dropout == identity in eval) -> Linear.
    h3 = jnp.dot(pooled.astype(jnp.bfloat16), w3_ref[...],
                 preferred_element_type=jnp.float32) + b3_ref[...]
    h3 = jnp.maximum(h3, 0.0)
    o_ref[0] = jnp.dot(h3.astype(jnp.bfloat16), w4_ref[...],
                       preferred_element_type=jnp.float32) + b4_ref[...]


# ------------------------- host-side parameter folding ----------------------

def _reflect(i, n):
    """Index map of ReflectionPad2d(1): -1 -> 1, n -> n - 2."""
    if i < 0:
        return -i
    if i >= n:
        return 2 * n - 2 - i
    return i


def fold_params(raw, H, W):
    """One-time folding of PyTorch-layout parameters into fused-kernel operands.

    t1: (H*W, OH1*OW1*C1)        = pad(1) o conv1(stride 2) o BN1-scale
    t2: (OH1*OW1*C1, OH2*OW2*C2) = pad(1) o conv2(stride 2) o BN2-scale, with
        output columns ordered (pool_offset a,b | channel c2 | pool_cell wi,wj)
        so the 2x2 max-pool is a max over contiguous column groups and the
        pooled order equals PyTorch's NCHW flatten.
    """
    w1 = np.asarray(raw["w_conv1"], np.float32)        # (C1, 1, K, K)
    w2 = np.asarray(raw["w_conv2"], np.float32)        # (C2, C1, K, K)
    C1, _, K, _ = w1.shape
    C2 = w2.shape[0]

    def bn_affine(bn):
        gamma, beta, mean, var, eps = bn
        gamma = np.asarray(gamma, np.float32)
        beta = np.asarray(beta, np.float32)
        mean = np.asarray(mean, np.float32)
        var = np.asarray(var, np.float32)
        scale = gamma / np.sqrt(var + eps)
        return scale, beta - mean * scale

    s1, o1 = bn_affine(raw["bn1"])
    s2, o2 = bn_affine(raw["bn2"])

    OH1 = (H + 2 - K) // 2 + 1
    OW1 = (W + 2 - K) // 2 + 1
    OH2 = (OH1 + 2 - K) // 2 + 1
    OW2 = (OW1 + 2 - K) // 2 + 1
    assert OH2 % 2 == 0 and OW2 % 2 == 0, "fused pool needs even conv2 output"
    kh, kw = OH2 // 2, OW2 // 2

    # conv1 operator: rows = input pixel (h*W + w); cols = (oh1, ow1, c1).
    t1 = np.zeros((H * W, OH1 * OW1 * C1), np.float32)
    for oh in range(OH1):
        for ow in range(OW1):
            col = (oh * OW1 + ow) * C1
            for di in range(K):
                hh = _reflect(2 * oh + di - 1, H)
                for dj in range(K):
                    ww = _reflect(2 * ow + dj - 1, W)
                    t1[hh * W + ww, col:col + C1] += s1 * w1[:, 0, di, dj]
    b1 = np.tile(o1, OH1 * OW1)

    # conv2 operator: rows = conv1 output (oh1, ow1, c1); cols = (a, b, c2,
    # wi, wj) with oh2 = wi*kh + a and ow2 = wj*kw + b (pool region layout).
    t2 = np.zeros((OH1 * OW1 * C1, kh * kw * C2 * 4), np.float32)
    for oh in range(OH2):
        wi, a = oh // kh, oh % kh
        for ow in range(OW2):
            wj, b = ow // kw, ow % kw
            colbase = (a * kw + b) * C2 * 4 + wi * 2 + wj
            for di in range(K):
                h1i = _reflect(2 * oh + di - 1, OH1)
                for dj in range(K):
                    w1i = _reflect(2 * ow + dj - 1, OW1)
                    for c1 in range(C1):
                        row = (h1i * OW1 + w1i) * C1 + c1
                        t2[row, colbase + 4 * np.arange(C2)] += \
                            s2 * w2[:, c1, di, dj]
    b2 = np.tile(np.repeat(o2, 4), kh * kw)

    w_fc1 = np.asarray(raw["w_fc1"], np.float32)       # (64, C2*4)
    w_fc2 = np.asarray(raw["w_fc2"], np.float32)       # (NC, 64)
    return {
        # bf16 matmul operands (MXU native); f32 biases added after the dot.
        "t1": jnp.asarray(t1, jnp.bfloat16),
        "b1": jnp.asarray(b1[None, :], jnp.float32),
        "t2": jnp.asarray(t2, jnp.bfloat16),
        "b2": jnp.asarray(b2[None, :], jnp.float32),
        "w3": jnp.asarray(w_fc1.T, jnp.bfloat16),       # pre-transposed once
        "b3": jnp.asarray(np.asarray(raw["b_fc1"], np.float32)[None, :]),
        "w4": jnp.asarray(w_fc2.T, jnp.bfloat16),       # pre-transposed once
        "b4": jnp.asarray(np.asarray(raw["b_fc2"], np.float32)[None, :]),
        "pool_groups": kh * kw,
    }


# --------------------------------- wrapper -----------------------------------

def cnn_forward(x, kp, *, block_b=1):
    """x: (B, H, W) float; kp: folded params from fold_params().

    block_b is the batch-block per grid step (raise to 64+ for large B; at the
    toy size block_b=1 gives a 2-step "parallel" grid -> both v7x TCs busy).
    """
    B = x.shape[0]
    HW, N1 = kp["t1"].shape
    N2 = kp["t2"].shape[1]
    NC = kp["w4"].shape[1]
    pool_groups = kp["pool_groups"]
    pool_width = N2 // pool_groups

    x_flat = x.reshape(B, -1).astype(jnp.float32)
    assert x_flat.shape[1] == HW, (x_flat.shape, HW)

    grid_b = pl.cdiv(B, block_b)
    b_pad = grid_b * block_b
    if b_pad != B:
        x_flat = jnp.pad(x_flat, ((0, b_pad - B), (0, 0)))
    xg = x_flat.reshape(grid_b, block_b, HW)

    def _full(shape):
        # whole-array block, resident across the batch grid (constant index).
        return pl.BlockSpec(shape, lambda *_: (0,) * len(shape))

    out = pl.pallas_call(
        functools.partial(_fused_cnn_kernel, neg_slope=0.2,
                          pool_groups=pool_groups, pool_width=pool_width),
        out_shape=jax.ShapeDtypeStruct((grid_b, block_b, NC), jnp.float32),
        grid=(grid_b,),
        in_specs=[
            pl.BlockSpec((1, block_b, HW), lambda i: (i, 0, 0)),   # x block
            _full(kp["t1"].shape), _full(kp["b1"].shape),          # conv1 folded
            _full(kp["t2"].shape), _full(kp["b2"].shape),          # conv2 folded
            _full(kp["w3"].shape), _full(kp["b3"].shape),          # fc1
            _full(kp["w4"].shape), _full(kp["b4"].shape),          # fc2
        ],
        out_specs=pl.BlockSpec((1, block_b, NC), lambda i: (i, 0, 0)),
        compiler_params=pltpu.CompilerParams(
            dimension_semantics=("parallel",)),
    )(xg, kp["t1"], kp["b1"], kp["t2"], kp["b2"],
      kp["w3"], kp["b3"], kp["w4"], kp["b4"])
    return out.reshape(b_pad, NC)[:B]


# ------------------------- pure-JAX reference (check) ------------------------

def ref_forward(x, raw):
    """Eval-mode reference mirroring the PyTorch module (f32, plain XLA)."""
    def refpad(t):
        return jnp.pad(t, ((0, 0), (0, 0), (1, 1), (1, 1)), mode="reflect")

    def conv(t, w):
        return jax.lax.conv_general_dilated(
            t, w, window_strides=(2, 2), padding="VALID",
            dimension_numbers=("NCHW", "OIHW", "NCHW"))

    def bn(t, bn_params):
        gamma, beta, mean, var, eps = bn_params
        s = gamma / jnp.sqrt(var + eps)
        return t * s[None, :, None, None] + (beta - mean * s)[None, :, None, None]

    h = x[:, None, :, :]                                    # unsqueeze(1) -> NCHW
    h = bn(conv(refpad(h), raw["w_conv1"]), raw["bn1"])
    h = jnp.where(h >= 0, h, 0.2 * h)
    h = bn(conv(refpad(h), raw["w_conv2"]), raw["bn2"])
    B, C, Hc, Wc = h.shape
    h = h.reshape(B, C, 2, Hc // 2, 2, Wc // 2).max(axis=(3, 5))
    h = h.reshape(B, -1)
    h = jnp.maximum(h @ raw["w_fc1"].T + raw["b_fc1"], 0.0)
    return h @ raw["w_fc2"].T + raw["b_fc2"]


# ----------------------------------- main ------------------------------------

def make_raw_params(key, in_channel, out_channel, num_classes):
    assert in_channel == 1, "forward() does x.unsqueeze(1), so Cin is always 1"
    ks = jax.random.split(key, 4)
    eps = 1e-5
    c1, c2 = out_channel, out_channel * 2

    def bn_defaults(c):
        return (jnp.ones((c,), jnp.float32),   # gamma
                jnp.zeros((c,), jnp.float32),  # beta
                jnp.zeros((c,), jnp.float32),  # running_mean
                jnp.ones((c,), jnp.float32),   # running_var
                eps)

    return {
        "w_conv1": 0.1 * jax.random.normal(ks[0], (c1, 1, 4, 4), jnp.float32),
        "bn1": bn_defaults(c1),
        "w_conv2": 0.1 * jax.random.normal(ks[1], (c2, c1, 4, 4), jnp.float32),
        "bn2": bn_defaults(c2),
        "w_fc1": 0.1 * jax.random.normal(ks[2], (64, out_channel * 8), jnp.float32),
        "b_fc1": jnp.zeros((64,), jnp.float32),
        "w_fc2": 0.1 * jax.random.normal(ks[3], (num_classes, 64), jnp.float32),
        "b_fc2": jnp.zeros((num_classes,), jnp.float32),
    }


if __name__ == "__main__":
    in_channel, out_channel, num_classes = 1, 4, 10     # unsqueeze(1) => Cin = 1
    B, H, W = 2, 16, 16

    key = jax.random.PRNGKey(0)
    pkey, xkey = jax.random.split(key)
    raw = make_raw_params(pkey, in_channel, out_channel, num_classes)
    kparams = fold_params(raw, H, W)
    x = jax.random.normal(xkey, (B, H, W), jnp.float32)

    out = jax.block_until_ready(cnn_forward(x, kparams, block_b=1))
    assert out.shape == (B, num_classes), out.shape
    assert bool(jnp.all(jnp.isfinite(out)))

    # Correctness check vs. pure-JAX f32 reference (kernel uses bf16 operands).
    ref = jax.block_until_ready(ref_forward(x, raw))
    assert jnp.allclose(out, ref, rtol=2e-2, atol=2e-2), (out, ref)

    print("KERNEL_OK")
</pallas_src>

<mosaic_0001>
module attributes {stable_mosaic.version = 11 : i64} {
  func.func @_fused_cnn_kernel(%arg0: i32, %arg1: memref<1x1x256xf32, #tpu.memory_space<vmem>>, %arg2: memref<256x256xbf16, #tpu.memory_space<vmem>>, %arg3: memref<1x256xf32, #tpu.memory_space<vmem>>, %arg4: memref<256x128xbf16, #tpu.memory_space<vmem>>, %arg5: memref<1x128xf32, #tpu.memory_space<vmem>>, %arg6: memref<32x64xbf16, #tpu.memory_space<vmem>>, %arg7: memref<1x64xf32, #tpu.memory_space<vmem>>, %arg8: memref<64x10xbf16, #tpu.memory_space<vmem>>, %arg9: memref<1x10xf32, #tpu.memory_space<vmem>>, %arg10: memref<1x1x10xf32, #tpu.memory_space<vmem>>) attributes {dimension_semantics = [#tpu.dimension_semantics<parallel>], iteration_bounds = array<i64: 2>, scalar_prefetch = 0 : i64, scratch_operands = 0 : i64, tpu.core_type = #tpu.core_type<tc>, window_params = [{transform_indices = @transform_0, window_bounds = array<i64: 1, 1, 256>}, {pipeline_mode = #tpu.pipeline_mode<synchronous>, transform_indices = @transform_1, window_bounds = array<i64: 256, 256>}, {pipeline_mode = #tpu.pipeline_mode<synchronous>, transform_indices = @transform_2, window_bounds = array<i64: 1, 256>}, {pipeline_mode = #tpu.pipeline_mode<synchronous>, transform_indices = @transform_3, window_bounds = array<i64: 256, 128>}, {pipeline_mode = #tpu.pipeline_mode<synchronous>, transform_indices = @transform_4, window_bounds = array<i64: 1, 128>}, {pipeline_mode = #tpu.pipeline_mode<synchronous>, transform_indices = @transform_5, window_bounds = array<i64: 32, 64>}, {pipeline_mode = #tpu.pipeline_mode<synchronous>, transform_indices = @transform_6, window_bounds = array<i64: 1, 64>}, {pipeline_mode = #tpu.pipeline_mode<synchronous>, transform_indices = @transform_7, window_bounds = array<i64: 64, 10>}, {pipeline_mode = #tpu.pipeline_mode<synchronous>, transform_indices = @transform_8, window_bounds = array<i64: 1, 10>}, {transform_indices = @transform_9, window_bounds = array<i64: 1, 1, 10>}]} {
    %c0 = arith.constant 0 : index
    %c0_0 = arith.constant 0 : index
    %c0_1 = arith.constant 0 : index
    %0 = vector.load %arg1[%c0, %c0_0, %c0_1] : memref<1x1x256xf32, #tpu.memory_space<vmem>>, vector<1x1x256xf32>
    %1 = vector.shape_cast %0 : vector<1x1x256xf32> to vector<1x256xf32>
    %2 = arith.truncf %1 : vector<1x256xf32> to vector<1x256xbf16>
    %c0_2 = arith.constant 0 : index
    %c0_3 = arith.constant 0 : index
    %3 = vector.load %arg2[%c0_2, %c0_3] : memref<256x256xbf16, #tpu.memory_space<vmem>>, vector<256x256xbf16>
    %cst = arith.constant dense<0.000000e+00> : vector<1x256xf32>
    %4 = tpu.matmul %2, %3, %cst {dimension_numbers = #tpu.dot_dimension_numbers<[1], [0], [0], [1], [0, 0, 1, 1], [], []>} : vector<1x256xbf16>, vector<256x256xbf16>, vector<1x256xf32> -> vector<1x256xf32>
    %c0_4 = arith.constant 0 : index
    %c0_5 = arith.constant 0 : index
    %5 = vector.load %arg3[%c0_4, %c0_5] : memref<1x256xf32, #tpu.memory_space<vmem>>, vector<1x256xf32>
    %6 = arith.addf %4, %5 : vector<1x256xf32>
    %cst_6 = arith.constant 0.000000e+00 : f32
    %7 = vector.broadcast %cst_6 : f32 to vector<1x256xf32>
    %8 = arith.cmpf oge, %6, %7 : vector<1x256xf32>
    %cst_7 = arith.constant 2.000000e-01 : f32
    %9 = vector.broadcast %cst_7 : f32 to vector<1x256xf32>
    %10 = arith.mulf %9, %6 : vector<1x256xf32>
    %11 = arith.select %8, %6, %10 : vector<1x256xi1>, vector<1x256xf32>
    %12 = arith.truncf %11 : vector<1x256xf32> to vector<1x256xbf16>
    %c0_8 = arith.constant 0 : index
    %c0_9 = arith.constant 0 : index
    %13 = vector.load %arg4[%c0_8, %c0_9] : memref<256x128xbf16, #tpu.memory_space<vmem>>, vector<256x128xbf16>
    %cst_10 = arith.constant dense<0.000000e+00> : vector<1x128xf32>
    %14 = tpu.matmul %12, %13, %cst_10 {dimension_numbers = #tpu.dot_dimension_numbers<[1], [0], [0], [1], [0, 0, 1, 1], [], []>} : vector<1x256xbf16>, vector<256x128xbf16>, vector<1x128xf32> -> vector<1x128xf32>
    %c0_11 = arith.constant 0 : index
    %c0_12 = arith.constant 0 : index
    %15 = vector.load %arg5[%c0_11, %c0_12] : memref<1x128xf32, #tpu.memory_space<vmem>>, vector<1x128xf32>
    %16 = arith.addf %14, %15 : vector<1x128xf32>
    %17 = vector.extract_strided_slice %16 {offsets = [0, 0], sizes = [1, 32], strides = [1, 1]} : vector<1x128xf32> to vector<1x32xf32>
    %18 = vector.extract_strided_slice %16 {offsets = [0, 32], sizes = [1, 32], strides = [1, 1]} : vector<1x128xf32> to vector<1x32xf32>
    %19 = arith.maximumf %17, %18 : vector<1x32xf32>
    %20 = vector.extract_strided_slice %16 {offsets = [0, 64], sizes = [1, 32], strides = [1, 1]} : vector<1x128xf32> to vector<1x32xf32>
    %21 = arith.maximumf %19, %20 : vector<1x32xf32>
    %22 = vector.extract_strided_slice %16 {offsets = [0, 96], sizes = [1, 32], strides = [1, 1]} : vector<1x128xf32> to vector<1x32xf32>
    %23 = arith.maximumf %21, %22 : vector<1x32xf32>
    %24 = arith.truncf %23 : vector<1x32xf32> to vector<1x32xbf16>
    %c0_13 = arith.constant 0 : index
    %c0_14 = arith.constant 0 : index
    %25 = vector.load %arg6[%c0_13, %c0_14] : memref<32x64xbf16, #tpu.memory_space<vmem>>, vector<32x64xbf16>
    %cst_15 = arith.constant dense<0.000000e+00> : vector<1x64xf32>
    %26 = tpu.matmul %24, %25, %cst_15 {dimension_numbers = #tpu.dot_dimension_numbers<[1], [0], [0], [1], [0, 0, 1, 1], [], []>} : vector<1x32xbf16>, vector<32x64xbf16>, vector<1x64xf32> -> vector<1x64xf32>
    %c0_16 = arith.constant 0 : index
    %c0_17 = arith.constant 0 : index
    %27 = vector.load %arg7[%c0_16, %c0_17] : memref<1x64xf32, #tpu.memory_space<vmem>>, vector<1x64xf32>
    %28 = arith.addf %26, %27 : vector<1x64xf32>
    %cst_18 = arith.constant 0.000000e+00 : f32
    %29 = vector.broadcast %cst_18 : f32 to vector<1x64xf32>
    %30 = arith.maximumf %28, %29 : vector<1x64xf32>
    %31 = arith.truncf %30 : vector<1x64xf32> to vector<1x64xbf16>
    %c0_19 = arith.constant 0 : index
    %c0_20 = arith.constant 0 : index
    %32 = vector.load %arg8[%c0_19, %c0_20] : memref<64x10xbf16, #tpu.memory_space<vmem>>, vector<64x10xbf16>
    %cst_21 = arith.constant dense<0.000000e+00> : vector<1x10xf32>
    %33 = tpu.matmul %31, %32, %cst_21 {dimension_numbers = #tpu.dot_dimension_numbers<[1], [0], [0], [1], [0, 0, 1, 1], [], []>} : vector<1x64xbf16>, vector<64x10xbf16>, vector<1x10xf32> -> vector<1x10xf32>
    %c0_22 = arith.constant 0 : index
    %c0_23 = arith.constant 0 : index
    %34 = vector.load %arg9[%c0_22, %c0_23] : memref<1x10xf32, #tpu.memory_space<vmem>>, vector<1x10xf32>
    %35 = arith.addf %33, %34 : vector<1x10xf32>
    %c0_24 = arith.constant 0 : index
    %c0_25 = arith.constant 0 : index
    %c0_26 = arith.constant 0 : index
    %36 = vector.load %arg10[%c0_24, %c0_25, %c0_26] : memref<1x1x10xf32, #tpu.memory_space<vmem>>, vector<1x1x10xf32>
    %37 = vector.shape_cast %36 : vector<1x1x10xf32> to vector<1x10xf32>
    %38 = vector.shape_cast %35 : vector<1x10xf32> to vector<1x1x10xf32>
    tpu.vector_store %arg10[%c0_24, %c0_25, %c0_26], %38 {strides = array<i32>} : memref<1x1x10xf32, #tpu.memory_space<vmem>>, vector<1x1x10xf32>,
    return
  }
  func.func @transform_0(%arg0: i32) -> (i32, i32, i32) {
    %c0_i32 = arith.constant 0 : i32
    %c0_i32_0 = arith.constant 0 : i32
    %c0_i32_1 = arith.constant 0 : i32
    return %arg0, %c0_i32, %c0_i32_0 : i32, i32, i32
  }
  func.func @transform_1(%arg0: i32) -> (i32, i32) {
    %c0_i32 = arith.constant 0 : i32
    %c0_i32_0 = arith.constant 0 : i32
    %c0_i32_1 = arith.constant 0 : i32
    return %c0_i32, %c0_i32_0 : i32, i32
  }
  func.func @transform_2(%arg0: i32) -> (i32, i32) {
    %c0_i32 = arith.constant 0 : i32
    %c0_i32_0 = arith.constant 0 : i32
    %c0_i32_1 = arith.constant 0 : i32
    return %c0_i32, %c0_i32_0 : i32, i32
  }
  func.func @transform_3(%arg0: i32) -> (i32, i32) {
    %c0_i32 = arith.constant 0 : i32
    %c0_i32_0 = arith.constant 0 : i32
    %c0_i32_1 = arith.constant 0 : i32
    return %c0_i32, %c0_i32_0 : i32, i32
  }
  func.func @transform_4(%arg0: i32) -> (i32, i32) {
    %c0_i32 = arith.constant 0 : i32
    %c0_i32_0 = arith.constant 0 : i32
    %c0_i32_1 = arith.constant 0 : i32
    return %c0_i32, %c0_i32_0 : i32, i32
  }
  func.func @transform_5(%arg0: i32) -> (i32, i32) {
    %c0_i32 = arith.constant 0 : i32
    %c0_i32_0 = arith.constant 0 : i32
    %c0_i32_1 = arith.constant 0 : i32
    return %c0_i32, %c0_i32_0 : i32, i32
  }
  func.func @transform_6(%arg0: i32) -> (i32, i32) {
    %c0_i32 = arith.constant 0 : i32
    %c0_i32_0 = arith.constant 0 : i32
    %c0_i32_1 = arith.constant 0 : i32
    return %c0_i32, %c0_i32_0 : i32, i32
  }
  func.func @transform_7(%arg0: i32) -> (i32, i32) {
    %c0_i32 = arith.constant 0 : i32
    %c0_i32_0 = arith.constant 0 : i32
    %c0_i32_1 = arith.constant 0 : i32
    return %c0_i32, %c0_i32_0 : i32, i32
  }
  func.func @transform_8(%arg0: i32) -> (i32, i32) {
    %c0_i32 = arith.constant 0 : i32
    %c0_i32_0 = arith.constant 0 : i32
    %c0_i32_1 = arith.constant 0 : i32
    return %c0_i32, %c0_i32_0 : i32, i32
  }
  func.func @transform_9(%arg0: i32) -> (i32, i32, i32) {
    %c0_i32 = arith.constant 0 : i32
    %c0_i32_0 = arith.constant 0 : i32
    %c0_i32_1 = arith.constant 0 : i32
    return %arg0, %c0_i32, %c0_i32_0 : i32, i32, i32
  }
}

</mosaic_0001>

<llo_original>
// kernel: tpu_custom_call.1
$region0: #{tpu_custom_call.1}
  #allocation0 [shape = 'u32[]', space=smem, size = 0x4, offset = 0x4, fixed_abs, tag = 'smem constant byte address 0x4 - core index']
  #allocation1 [shape = 'u32[144,128]{1,0:T(1,128)}', space=vmem, size = 0x12000, scoped, tag = 'internal scratch']
  %s0 = inlined_call_operand.vmem [shape: f32[2,1,256], index: 0, kind: input, shape index: {}]
  %s1 = inlined_call_operand.hbm [shape: bf16[256,256], index: 1, kind: input, shape index: {}]
  %s2 = inlined_call_operand.vmem [shape: f32[1,256], index: 2, kind: input, shape index: {}]
  %s3 = inlined_call_operand.hbm [shape: bf16[256,128], index: 3, kind: input, shape index: {}]
  %s4 = inlined_call_operand.vmem [shape: f32[1,128], index: 4, kind: input, shape index: {}]
  %s5 = inlined_call_operand.vmem [shape: bf16[32,64], index: 5, kind: input, shape index: {}]
  %s6 = inlined_call_operand.vmem [shape: f32[1,64], index: 6, kind: input, shape index: {}]
  %s7 = inlined_call_operand.vmem [shape: bf16[64,10], index: 7, kind: input, shape index: {}]
  %s8 = inlined_call_operand.vmem [shape: f32[1,10], index: 8, kind: input, shape index: {}]
  %s9 = inlined_call_operand.hbm [shape: f32[2,1,10], index: 9, kind: output, shape index: {}]
  %s10 = sld [smem:[#allocation0]]
  $region77: #{tpu_custom_call.1} parent=0
    _
  %s12 = ssub.s32 1, %s10
  %s13 = scalar_select 0, %s12, %s10
  $region1: #{tpu_custom_call.1} parent=0
    #allocation2 [shape = 'u8[131072]{0}', space=vmem, size = 0x20000, scoped, tag = 'input window, operand 1, single buffered']
    #allocation3 [shape = 's32[2]{0}', space=sflag, size = 0x8, scoped, tag = 'scoped memory for tpu_custom_call.1']
    #allocation4 [shape = 's32[2]{0}', space=sflag, size = 0x8, scoped, tag = 'scoped memory for tpu_custom_call.1']
    #allocation5 [shape = 'u8[65536]{0}', space=vmem, size = 0x10000, scoped, tag = 'input window, operand 3, single buffered']
    #allocation6 [shape = 's32[1]{0}', space=sflag, size = 0x4, scoped, tag = 'scoped memory for tpu_custom_call.1']
    #allocation7 [shape = 'u8[1024]{0}', space=vmem, size = 0x400, scoped, tag = 'output window, operand 0']
    %14 = vsyncpa [#allocation3], 0
    %15 = vsyncpa [#allocation6], 0
    %16 = vsyncpa [#allocation4], 0
    %s17 = scalar_lea.sflag [#allocation4], 1
    %18 = vsyncpa %s17, 0
    loop: start=0, step=1, limit=4
    $region2: #{tpu_custom_call.1} parent=1 // loop_pre_header
      _
    $region3: #{tpu_custom_call.1} parent=1 // loop_header
      %s20 = sphi 0, %s24
      %p21 = scmp.ge.s32.totalorder %s20, 4
      %s30 = sphi 0, %s32
      %s33 = sphi 0, %s30
      %s34 = sphi 0, %s33
      %s50 = sphi 0, %s34
      %s54 = sphi 0, %s54
      %s56 = sphi 0, %s54
      %s57 = sphi 0, %s56
      %s71 = sphi 0, %s57
      %s75 = sphi 0, %s75
      %s77 = sphi 0, %s75
      %s78 = sphi 0, %s77
      %s92 = sphi 0, %s78
      %s96 = sphi 0, %s96
      %s98 = sphi 0, %s96
      %s99 = sphi 0, %s98
      %s113 = sphi 0, %s99
      %s117 = sphi 0, %s117
      %s119 = sphi 0, %s117
      %s120 = sphi 0, %s119
      %s134 = sphi 0, %s120
      %s138 = sphi 0, %s138
      %s140 = sphi 0, %s138
      %s141 = sphi 0, %s140
      %s155 = sphi 0, %s141
      %s159 = sphi 0, %s159
      %s161 = sphi 0, %s159
      %s162 = sphi 0, %s161
      %s176 = sphi 0, %s162
      %s180 = sphi 0, %s180
      %s182 = sphi 0, %s180
      %s183 = sphi 0, %s182
      %s197 = sphi 0, %s183
      %s201 = sphi 0, %s201
      %s203 = sphi 0, %s201
      %s204 = sphi 0, %s203
      %s218 = sphi 0, %s204
      %s224 = sphi 0, %s226
      %s227 = sphi 0, %s224
      %s228 = sphi 0, %s227
      %s244 = sphi 0, %s228
    $region4: #{tpu_custom_call.1} parent=1 // loop_header_branch
      %23 = sbr.rel (%p21) target = $region8
    $region5: #{tpu_custom_call.1} parent=1 // loop_body
      %s25 = ssub.s32 %s20, 1
      %s26 = ssub.s32 %s20, 2
      %s27 = sadd.s32 %s20, 1
      %s28 = ssub.s32 %s20, %s27
      %p29 = scmp.eq.s32.totalorder %s28, 0
      %s31 = sadd.s32 %s30, 1
      %s32 = scalar_select %p29, %s30, %s31
      %p35 = pneg %p29
      %p36 = scmp.eq.s32.totalorder %s20, 1
      %p37 = por %p35, %p36
      %p38 = scmp.ne.s32.totalorder %s30, %s33
      %p39 = scmp.eq.s32.totalorder %s20, 0
      %p40 = por %p38, %p39
      %p41 = scmp.ne.s32.totalorder %s30, %s33
      %p42 = scmp.eq.s32.totalorder %s25, 1
      %p43 = por %p41, %p42
      %p44 = scmp.ne.s32.totalorder %s33, %s34
      %p45 = scmp.eq.s32.totalorder %s25, 0
      %p46 = por %p44, %p45
      %p47 = scmp.ne.s32.totalorder %s33, %s34
      %p48 = scmp.eq.s32.totalorder %s26, 1
      %p49 = por %p47, %p48
      %p51 = scmp.ne.s32.totalorder %s34, %s50
      %p52 = scmp.eq.s32.totalorder %s26, 0
      %p53 = por %p51, %p52
      %s55 = sadd.s32 %s54, 1
      %p58 = scmp.eq.s32.totalorder %s20, 1
      %p59 = scmp.ne.s32.totalorder %s54, %s56
      %p60 = scmp.eq.s32.totalorder %s20, 0
      %p61 = por %p59, %p60
      %p62 = scmp.ne.s32.totalorder %s54, %s56
      %p63 = scmp.eq.s32.totalorder %s25, 1
      %p64 = por %p62, %p63
      %p65 = scmp.ne.s32.totalorder %s56, %s57
      %p66 = scmp.eq.s32.totalorder %s25, 0
      %p67 = por %p65, %p66
      %p68 = scmp.ne.s32.totalorder %s56, %s57
      %p69 = scmp.eq.s32.totalorder %s26, 1
      %p70 = por %p68, %p69
      %p72 = scmp.ne.s32.totalorder %s57, %s71
      %p73 = scmp.eq.s32.totalorder %s26, 0
      %p74 = por %p72, %p73
      %s76 = sadd.s32 %s75, 1
      %p79 = scmp.eq.s32.totalorder %s20, 1
      %p80 = scmp.ne.s32.totalorder %s75, %s77
      %p81 = scmp.eq.s32.totalorder %s20, 0
      %p82 = por %p80, %p81
      %p83 = scmp.ne.s32.totalorder %s75, %s77
      %p84 = scmp.eq.s32.totalorder %s25, 1
      %p85 = por %p83, %p84
      %p86 = scmp.ne.s32.totalorder %s77, %s78
      %p87 = scmp.eq.s32.totalorder %s25, 0
      %p88 = por %p86, %p87
      %p89 = scmp.ne.s32.totalorder %s77, %s78
      %p90 = scmp.eq.s32.totalorder %s26, 1
      %p91 = por %p89, %p90
      %p93 = scmp.ne.s32.totalorder %s78, %s92
      %p94 = scmp.eq.s32.totalorder %s26, 0
      %p95 = por %p93, %p94
      %s97 = sadd.s32 %s96, 1
      %p100 = scmp.eq.s32.totalorder %s20, 1
      %p101 = scmp.ne.s32.totalorder %s96, %s98
      %p102 = scmp.eq.s32.totalorder %s20, 0
      %p103 = por %p101, %p102
      %p104 = scmp.ne.s32.totalorder %s96, %s98
      %p105 = scmp.eq.s32.totalorder %s25, 1
      %p106 = por %p104, %p105
      %p107 = scmp.ne.s32.totalorder %s98, %s99
      %p108 = scmp.eq.s32.totalorder %s25, 0
      %p109 = por %p107, %p108
      %p110 = scmp.ne.s32.totalorder %s98, %s99
      %p111 = scmp.eq.s32.totalorder %s26, 1
      %p112 = por %p110, %p111
      %p114 = scmp.ne.s32.totalorder %s99, %s113
      %p115 = scmp.eq.s32.totalorder %s26, 0
      %p116 = por %p114, %p115
      %s118 = sadd.s32 %s117, 1
      %p121 = scmp.eq.s32.totalorder %s20, 1
      %p122 = scmp.ne.s32.totalorder %s117, %s119
      %p123 = scmp.eq.s32.totalorder %s20, 0
      %p124 = por %p122, %p123
      %p125 = scmp.ne.s32.totalorder %s117, %s119
      %p126 = scmp.eq.s32.totalorder %s25, 1
      %p127 = por %p125, %p126
      %p128 = scmp.ne.s32.totalorder %s119, %s120
      %p129 = scmp.eq.s32.totalorder %s25, 0
      %p130 = por %p128, %p129
      %p131 = scmp.ne.s32.totalorder %s119, %s120
      %p132 = scmp.eq.s32.totalorder %s26, 1
      %p133 = por %p131, %p132
      %p135 = scmp.ne.s32.totalorder %s120, %s134
      %p136 = scmp.eq.s32.totalorder %s26, 0
      %p137 = por %p135, %p136
      %s139 = sadd.s32 %s138, 1
      %p142 = scmp.eq.s32.totalorder %s20, 1
      %p143 = scmp.ne.s32.totalorder %s138, %s140
      %p144 = scmp.eq.s32.totalorder %s20, 0
      %p145 = por %p143, %p144
      %p146 = scmp.ne.s32.totalorder %s138, %s140
      %p147 = scmp.eq.s32.totalorder %s25, 1
      %p148 = por %p146, %p147
      %p149 = scmp.ne.s32.totalorder %s140, %s141
      %p150 = scmp.eq.s32.totalorder %s25, 0
      %p151 = por %p149, %p150
      %p152 = scmp.ne.s32.totalorder %s140, %s141
      %p153 = scmp.eq.s32.totalorder %s26, 1
      %p154 = por %p152, %p153
      %p156 = scmp.ne.s32.totalorder %s141, %s155
      %p157 = scmp.eq.s32.totalorder %s26, 0
      %p158 = por %p156, %p157
      %s160 = sadd.s32 %s159, 1
      %p163 = scmp.eq.s32.totalorder %s20, 1
      %p164 = scmp.ne.s32.totalorder %s159, %s161
      %p165 = scmp.eq.s32.totalorder %s20, 0
      %p166 = por %p164, %p165
      %p167 = scmp.ne.s32.totalorder %s159, %s161
      %p168 = scmp.eq.s32.totalorder %s25, 1
      %p169 = por %p167, %p168
      %p170 = scmp.ne.s32.totalorder %s161, %s162
      %p171 = scmp.eq.s32.totalorder %s25, 0
      %p172 = por %p170, %p171
      %p173 = scmp.ne.s32.totalorder %s161, %s162
      %p174 = scmp.eq.s32.totalorder %s26, 1
      %p175 = por %p173, %p174
      %p177 = scmp.ne.s32.totalorder %s162, %s176
      %p178 = scmp.eq.s32.totalorder %s26, 0
      %p179 = por %p177, %p178
      %s181 = sadd.s32 %s180, 1
      %p184 = scmp.eq.s32.totalorder %s20, 1
      %p185 = scmp.ne.s32.totalorder %s180, %s182
      %p186 = scmp.eq.s32.totalorder %s20, 0
      %p187 = por %p185, %p186
      %p188 = scmp.ne.s32.totalorder %s180, %s182
      %p189 = scmp.eq.s32.totalorder %s25, 1
      %p190 = por %p188, %p189
      %p191 = scmp.ne.s32.totalorder %s182, %s183
      %p192 = scmp.eq.s32.totalorder %s25, 0
      %p193 = por %p191, %p192
      %p194 = scmp.ne.s32.totalorder %s182, %s183
      %p195 = scmp.eq.s32.totalorder %s26, 1
      %p196 = por %p194, %p195
      %p198 = scmp.ne.s32.totalorder %s183, %s197
      %p199 = scmp.eq.s32.totalorder %s26, 0
      %p200 = por %p198, %p199
      %s202 = sadd.s32 %s201, 1
      %p205 = scmp.eq.s32.totalorder %s20, 1
      %p206 = scmp.ne.s32.totalorder %s201, %s203
      %p207 = scmp.eq.s32.totalorder %s20, 0
      %p208 = por %p206, %p207
      %p209 = scmp.ne.s32.totalorder %s201, %s203
      %p210 = scmp.eq.s32.totalorder %s25, 1
      %p211 = por %p209, %p210
      %p212 = scmp.ne.s32.totalorder %s203, %s204
      %p213 = scmp.eq.s32.totalorder %s25, 0
      %p214 = por %p212, %p213
      %p215 = scmp.ne.s32.totalorder %s203, %s204
      %p216 = scmp.eq.s32.totalorder %s26, 1
      %p217 = por %p215, %p216
      %p219 = scmp.ne.s32.totalorder %s204, %s218
      %p220 = scmp.eq.s32.totalorder %s26, 0
      %p221 = por %p219, %p220
      %s222 = ssub.s32 %s20, %s27
      %p223 = scmp.eq.s32.totalorder %s222, 0
      %s225 = sadd.s32 %s224, 1
      %s226 = scalar_select %p223, %s224, %s225
      %p229 = pneg %p223
      %p230 = scmp.eq.s32.totalorder %s20, 1
      %p231 = por %p229, %p230
      %p232 = scmp.ne.s32.totalorder %s224, %s227
      %p233 = scmp.eq.s32.totalorder %s20, 0
      %p234 = por %p232, %p233
      %p235 = scmp.ne.s32.totalorder %s224, %s227
      %p236 = scmp.eq.s32.totalorder %s25, 1
      %p237 = por %p235, %p236
      %p238 = scmp.ne.s32.totalorder %s227, %s228
      %p239 = scmp.eq.s32.totalorder %s25, 0
      %p240 = por %p238, %p239
      %p241 = scmp.ne.s32.totalorder %s227, %s228
      %p242 = scmp.eq.s32.totalorder %s26, 1
      %p243 = por %p241, %p242
      %p245 = scmp.ne.s32.totalorder %s228, %s244
      %p246 = scmp.eq.s32.totalorder %s26, 0
      %p247 = por %p245, %p246
      %p248 = scmp.le.s32.totalorder 1, %s20
      %p249 = scmp.lt.s32.totalorder %s20, 3
      %p250 = pnand %p248, %p249
      %p251 = pneg %p250
      // Predicated region
      $region9: #{tpu_custom_call.1} parent=5 // pred_check
        _
      $region10: #{tpu_custom_call.1} parent=5 // pred_check_branch
        %253 = sbr.rel (%p250) target = $region12
      $region11: #{tpu_custom_call.1} parent=5 // pred_region
        %s254 = ssub.s32 %s20, 1
        // Predicated region
        $region13: #{tpu_custom_call.1} parent=11 // pred_check
          %p255 = pneg %p67
        $region14: #{tpu_custom_call.1} parent=11 // pred_check_branch
          %257 = sbr.rel (%p255) target = $region16
        $region15: #{tpu_custom_call.1} parent=11 // pred_region
          %s259 = ssub.s32 4096, 4096
          %260 = vsyncadd [#allocation3], %s259
          %s261 = sshll.u32 [#allocation2], 4
          %s262 = int_to_ptr.vmem [resolvable:$true] %s261
          %267 = dma.hbm_to_vmem [thread:$0]  %s1, 4096, %s262, [#allocation3], 128, 128, 8
        $region16: #{tpu_custom_call.1} parent=11 // pred_fallthru
          _
        // Predicated region
        $region17: #{tpu_custom_call.1} parent=11 // pred_check
          %p268 = pneg %p88
        $region18: #{tpu_custom_call.1} parent=11 // pred_check_branch
          %270 = sbr.rel (%p268) target = $region20
        $region19: #{tpu_custom_call.1} parent=11 // pred_region
          _
        $region20: #{tpu_custom_call.1} parent=11 // pred_fallthru
          _
        // Predicated region
        $region21: #{tpu_custom_call.1} parent=11 // pred_check
          %p271 = pneg %p109
        $region22: #{tpu_custom_call.1} parent=11 // pred_check_branch
          %273 = sbr.rel (%p271) target = $region24
        $region23: #{tpu_custom_call.1} parent=11 // pred_region
          %s275 = ssub.s32 2048, 2048
          %276 = vsyncadd [#allocation6], %s275
          %s277 = sshll.u32 [#allocation5], 4
          %s278 = int_to_ptr.vmem [resolvable:$true] %s277
          %283 = dma.hbm_to_vmem [thread:$0]  %s3, 2048, %s278, [#allocation6], 64, 64, 4
        $region24: #{tpu_custom_call.1} parent=11 // pred_fallthru
          _
        // Predicated region
        $region25: #{tpu_custom_call.1} parent=11 // pred_check
          %p284 = pneg %p130
        $region26: #{tpu_custom_call.1} parent=11 // pred_check_branch
          %286 = sbr.rel (%p284) target = $region28
        $region27: #{tpu_custom_call.1} parent=11 // pred_region
          _
        $region28: #{tpu_custom_call.1} parent=11 // pred_fallthru
          _
        // Predicated region
        $region29: #{tpu_custom_call.1} parent=11 // pred_check
          %p287 = pneg %p151
        $region30: #{tpu_custom_call.1} parent=11 // pred_check_branch
          %289 = sbr.rel (%p287) target = $region32
        $region31: #{tpu_custom_call.1} parent=11 // pred_region
          _
        $region32: #{tpu_custom_call.1} parent=11 // pred_fallthru
          _
        // Predicated region
        $region33: #{tpu_custom_call.1} parent=11 // pred_check
          %p290 = pneg %p172
        $region34: #{tpu_custom_call.1} parent=11 // pred_check_branch
          %292 = sbr.rel (%p290) target = $region36
        $region35: #{tpu_custom_call.1} parent=11 // pred_region
          _
        $region36: #{tpu_custom_call.1} parent=11 // pred_fallthru
          _
        // Predicated region
        $region37: #{tpu_custom_call.1} parent=11 // pred_check
          %p293 = pneg %p193
        $region38: #{tpu_custom_call.1} parent=11 // pred_check_branch
          %295 = sbr.rel (%p293) target = $region40
        $region39: #{tpu_custom_call.1} parent=11 // pred_region
          _
        $region40: #{tpu_custom_call.1} parent=11 // pred_fallthru
          _
        // Predicated region
        $region41: #{tpu_custom_call.1} parent=11 // pred_check
          %p296 = pneg %p214
        $region42: #{tpu_custom_call.1} parent=11 // pred_check_branch
          %298 = sbr.rel (%p296) target = $region44
        $region43: #{tpu_custom_call.1} parent=11 // pred_region
          _
        $region44: #{tpu_custom_call.1} parent=11 // pred_fallthru
          _
      $region12: #{tpu_custom_call.1} parent=5 // pred_fallthru
        _
      %p299 = scmp.lt.s32.totalorder %s20, 2
      // Predicated region
      $region45: #{tpu_custom_call.1} parent=5 // pred_check
        %p300 = pneg %p299
      $region46: #{tpu_custom_call.1} parent=5 // pred_check_branch
        %302 = sbr.rel (%p300) target = $region48
      $region47: #{tpu_custom_call.1} parent=5 // pred_region
        // Predicated region
        $region49: #{tpu_custom_call.1} parent=47 // pred_check
          %p303 = pneg %p40
        $region50: #{tpu_custom_call.1} parent=47 // pred_check_branch
          %305 = sbr.rel (%p303) target = $region52
        $region51: #{tpu_custom_call.1} parent=47 // pred_region
          %p306 = scmp.lt.s32.totalorder %s20, 1
          %s307 = scalar_select %p306, %s20, 1
          %s308 = smul.addr %s307, 2
          %s309 = scalar_lea.vmem %s0, %s308
        $region52: #{tpu_custom_call.1} parent=47 // pred_fallthru
          _
      $region48: #{tpu_custom_call.1} parent=5 // pred_fallthru
        _
      %p310 = scmp.le.s32.totalorder 1, %s20
      %p311 = scmp.lt.s32.totalorder %s20, 3
      %p312 = pnand %p310, %p311
      %p313 = pneg %p312
      // Predicated region
      $region53: #{tpu_custom_call.1} parent=5 // pred_check
        _
      $region54: #{tpu_custom_call.1} parent=5 // pred_check_branch
        %315 = sbr.rel (%p312) target = $region56
      $region55: #{tpu_custom_call.1} parent=5 // pred_region
        %s316 = ssub.s32 %s20, 1
        // Predicated region
        $region57: #{tpu_custom_call.1} parent=55 // pred_check
          %p317 = pneg %p67
        $region58: #{tpu_custom_call.1} parent=55 // pred_check_branch
          %319 = sbr.rel (%p317) target = $region60
        $region59: #{tpu_custom_call.1} parent=55 // pred_region
          %320 = dma.done [#allocation3], 4096
        $region60: #{tpu_custom_call.1} parent=55 // pred_fallthru
          _
        // Predicated region
        $region61: #{tpu_custom_call.1} parent=55 // pred_check
          %p321 = pneg %p109
        $region62: #{tpu_custom_call.1} parent=55 // pred_check_branch
          %323 = sbr.rel (%p321) target = $region64
        $region63: #{tpu_custom_call.1} parent=55 // pred_region
          %324 = dma.done [#allocation6], 2048
        $region64: #{tpu_custom_call.1} parent=55 // pred_fallthru
          _
        %p325 = scmp.lt.s32.totalorder %s25, 1
        %s326 = scalar_select %p325, %s25, 1
        %s327 = smul.addr %s326, 2
        %s328 = scalar_lea.vmem %s0, %s327
        %p329 = pneg %p46
        %p330 = pneg %p43
        %p331 = pneg %p67
        %p332 = pneg %p64
        %p333 = pneg %p88
        %p334 = pneg %p85
        %p335 = pneg %p109
        %p336 = pneg %p106
        %p337 = pneg %p130
        %p338 = pneg %p127
        %p339 = pneg %p151
        %p340 = pneg %p148
        %p341 = pneg %p172
        %p342 = pneg %p169
        %p343 = pneg %p193
        %p344 = pneg %p190
        %p345 = pneg %p214
        %p346 = pneg %p211
        %p347 = pneg %p240
        %p348 = pneg %p237
        %s349 = sand.u32 %s227, 1
        %s350 = scalar_lea.sflag [#allocation4], %s349
        %s351 = sand.u32 %s227, 1
        %s352 = scalar_lea.vmem [#allocation7], %s351
        %p353 = scmp.lt.s32.totalorder %s25, 1
        %s354 = scalar_select %p353, %s25, 1
        %s355 = smul.addr %s354, 2
        %s356 = scalar_lea.vmem %s0, %s355
        %v358 = vld [vmem:[%s356] sm:$0x3]
        %v360 = vlaneseq
        %v361 = vshrl.u32 %v360, 7
        %v362 = vsub.s32 0, %v361
        %v363 = vrot.slane %v358, %v362
        %v364 = vlaneseq
        %v365 = vshrl.u32 %v364, 7
        %v366 = vsub.s32 1, %v365
        %v367 = vrot.slane %v358, %v366
        %v370 = vpack.c.bf16 %v363, %v363
        %v371 = vpack.c.bf16 %v367, %v367
        %v372 = vld [vmem:[#allocation2] sm:$0xff]
        %v373 = vld [vmem:[#allocation2 + $0x8] sm:$0xff]
        %v374 = vld [vmem:[#allocation2 + $0x10] sm:$0xff]
        %v375 = vld [vmem:[#allocation2 + $0x18] sm:$0xff]
        %v376 = vld [vmem:[#allocation2 + $0x20] sm:$0xff]
        %v377 = vld [vmem:[#allocation2 + $0x28] sm:$0xff]
        %v378 = vld [vmem:[#allocation2 + $0x30] sm:$0xff]
        %v379 = vld [vmem:[#allocation2 + $0x38] sm:$0xff]
        %v380 = vld [vmem:[#allocation2 + $0x40] sm:$0xff]
        %v381 = vld [vmem:[#allocation2 + $0x48] sm:$0xff]
        %v382 = vld [vmem:[#allocation2 + $0x50] sm:$0xff]
        %v383 = vld [vmem:[#allocation2 + $0x58] sm:$0xff]
        %v384 = vld [vmem:[#allocation2 + $0x60] sm:$0xff]
        %v385 = vld [vmem:[#allocation2 + $0x68] sm:$0xff]
        %v386 = vld [vmem:[#allocation2 + $0x70] sm:$0xff]
        %v387 = vld [vmem:[#allocation2 + $0x78] sm:$0xff]
        %v388 = vld [vmem:[#allocation2 + $0x80] sm:$0xff]
        %v389 = vld [vmem:[#allocation2 + $0x88] sm:$0xff]
        %v390 = vld [vmem:[#allocation2 + $0x90] sm:$0xff]
        %v391 = vld [vmem:[#allocation2 + $0x98] sm:$0xff]
        %v392 = vld [vmem:[#allocation2 + $0xa0] sm:$0xff]
        %v393 = vld [vmem:[#allocation2 + $0xa8] sm:$0xff]
        %v394 = vld [vmem:[#allocation2 + $0xb0] sm:$0xff]
        %v395 = vld [vmem:[#allocation2 + $0xb8] sm:$0xff]
        %v396 = vld [vmem:[#allocation2 + $0xc0] sm:$0xff]
        %v397 = vld [vmem:[#allocation2 + $0xc8] sm:$0xff]
        %v398 = vld [vmem:[#allocation2 + $0xd0] sm:$0xff]
        %v399 = vld [vmem:[#allocation2 + $0xd8] sm:$0xff]
        %v400 = vld [vmem:[#allocation2 + $0xe0] sm:$0xff]
        %v401 = vld [vmem:[#allocation2 + $0xe8] sm:$0xff]
        %v402 = vld [vmem:[#allocation2 + $0xf0] sm:$0xff]
        %v403 = vld [vmem:[#allocation2 + $0xf8] sm:$0xff]
        %v404 = vld [vmem:[%s2] sm:$0x3]
        %v437 = vunpack.c.l.b16 %v372
        %v438 = vunpack.c.h.b16 %v372
        %v439 = vunpack.c.l.b16 %v373
        %v440 = vunpack.c.h.b16 %v373
        %v441 = vunpack.c.l.b16 %v374
        %v442 = vunpack.c.h.b16 %v374
        %v443 = vunpack.c.l.b16 %v375
        %v444 = vunpack.c.h.b16 %v375
        %v445 = vunpack.c.l.b16 %v376
        %v446 = vunpack.c.h.b16 %v376
        %v447 = vunpack.c.l.b16 %v377
        %v448 = vunpack.c.h.b16 %v377
        %v449 = vunpack.c.l.b16 %v378
        %v450 = vunpack.c.h.b16 %v378
        %v451 = vunpack.c.l.b16 %v379
        %v452 = vunpack.c.h.b16 %v379
        %v453 = vunpack.c.l.b16 %v380
        %v454 = vunpack.c.h.b16 %v380
        %v455 = vunpack.c.l.b16 %v381
        %v456 = vunpack.c.h.b16 %v381
        %v457 = vunpack.c.l.b16 %v382
        %v458 = vunpack.c.h.b16 %v382
        %v459 = vunpack.c.l.b16 %v383
        %v460 = vunpack.c.h.b16 %v383
        %v461 = vunpack.c.l.b16 %v384
        %v462 = vunpack.c.h.b16 %v384
        %v463 = vunpack.c.l.b16 %v385
        %v464 = vunpack.c.h.b16 %v385
        %v465 = vunpack.c.l.b16 %v386
        %v466 = vunpack.c.h.b16 %v386
        %v467 = vunpack.c.l.b16 %v387
        %v468 = vunpack.c.h.b16 %v387
        %v469 = vunpack.c.l.b16 %v388
        %v470 = vunpack.c.h.b16 %v388
        %v471 = vunpack.c.l.b16 %v389
        %v472 = vunpack.c.h.b16 %v389
        %v473 = vunpack.c.l.b16 %v390
        %v474 = vunpack.c.h.b16 %v390
        %v475 = vunpack.c.l.b16 %v391
        %v476 = vunpack.c.h.b16 %v391
        %v477 = vunpack.c.l.b16 %v392
        %v478 = vunpack.c.h.b16 %v392
        %v479 = vunpack.c.l.b16 %v393
        %v480 = vunpack.c.h.b16 %v393
        %v481 = vunpack.c.l.b16 %v394
        %v482 = vunpack.c.h.b16 %v394
        %v483 = vunpack.c.l.b16 %v395
        %v484 = vunpack.c.h.b16 %v395
        %v485 = vunpack.c.l.b16 %v396
        %v486 = vunpack.c.h.b16 %v396
        %v487 = vunpack.c.l.b16 %v397
        %v488 = vunpack.c.h.b16 %v397
        %v489 = vunpack.c.l.b16 %v398
        %v490 = vunpack.c.h.b16 %v398
        %v491 = vunpack.c.l.b16 %v399
        %v492 = vunpack.c.h.b16 %v399
        %v493 = vunpack.c.l.b16 %v400
        %v494 = vunpack.c.h.b16 %v400
        %v495 = vunpack.c.l.b16 %v401
        %v496 = vunpack.c.h.b16 %v401
        %v497 = vunpack.c.l.b16 %v402
        %v498 = vunpack.c.h.b16 %v402
        %v499 = vunpack.c.l.b16 %v403
        %v500 = vunpack.c.h.b16 %v403
        %v501 = vpack.c.b16 %v439, %v437
        %v502 = vpack.c.b16 %v440, %v438
        %v503 = vpack.c.b16 %v443, %v441
        %v504 = vpack.c.b16 %v444, %v442
        %v505 = vpack.c.b16 %v447, %v445
        %v506 = vpack.c.b16 %v448, %v446
        %v507 = vpack.c.b16 %v451, %v449
        %v508 = vpack.c.b16 %v452, %v450
        %v509 = vpack.c.b16 %v455, %v453
        %v510 = vpack.c.b16 %v456, %v454
        %v511 = vpack.c.b16 %v459, %v457
        %v512 = vpack.c.b16 %v460, %v458
        %v513 = vpack.c.b16 %v463, %v461
        %v514 = vpack.c.b16 %v464, %v462
        %v515 = vpack.c.b16 %v467, %v465
        %v516 = vpack.c.b16 %v468, %v466
        %v517 = vpack.c.b16 %v471, %v469
        %v518 = vpack.c.b16 %v472, %v470
        %v519 = vpack.c.b16 %v475, %v473
        %v520 = vpack.c.b16 %v476, %v474
        %v521 = vpack.c.b16 %v479, %v477
        %v522 = vpack.c.b16 %v480, %v478
        %v523 = vpack.c.b16 %v483, %v481
        %v524 = vpack.c.b16 %v484, %v482
        %v525 = vpack.c.b16 %v487, %v485
        %v526 = vpack.c.b16 %v488, %v486
        %v527 = vpack.c.b16 %v491, %v489
        %v528 = vpack.c.b16 %v492, %v490
        %v529 = vpack.c.b16 %v495, %v493
        %v530 = vpack.c.b16 %v496, %v494
        %v531 = vpack.c.b16 %v499, %v497
        %v532 = vpack.c.b16 %v500, %v498
        %v566 = vlaneseq
        %v567 = vshrl.u32 %v566, 7
        %v568 = vsub.s32 0, %v567
        %v569 = vrot.slane %v404, %v568
        %v570 = vlaneseq
        %v571 = vshrl.u32 %v570, 7
        %v572 = vsub.s32 1, %v571
        %v573 = vrot.slane %v404, %v572
        %576 = vmatprep.subr.bf16.mxu0 %v516
        %577 = vmatpush1.bf16.msra.mxu0 %v515
        %578 = vmatprep.subr.bf16.mxu0 %v514
        %579 = vmatpush1.bf16.msra.mxu0 %v513
        %580 = vmatprep.subr.bf16.mxu0 %v512
        %581 = vmatpush1.bf16.msra.mxu0 %v511
        %582 = vmatprep.subr.bf16.mxu0 %v510
        %583 = vmatpush1.bf16.msra.mxu0 %v509
        %584 = vmatprep.subr.bf16.mxu0 %v508
        %585 = vmatpush1.bf16.msra.mxu0 %v507
        %586 = vmatprep.subr.bf16.mxu0 %v506
        %587 = vmatpush1.bf16.msra.mxu0 %v505
        %588 = vmatprep.subr.bf16.mxu0 %v504
        %589 = vmatpush1.bf16.msra.mxu0 %v503
        %590 = vmatprep.subr.bf16.mxu0 %v502
        %591 = vmatpush1.bf16.msra.mxu0 %v501
        %592 = vmatprep.subr.bf16.mxu0 %v532
        %593 = vmatpush2.bf16.msra.mxu0 %v531
        %594 = vmatprep.subr.bf16.mxu0 %v530
        %595 = vmatpush2.bf16.msra.mxu0 %v529
        %596 = vmatprep.subr.bf16.mxu0 %v528
        %597 = vmatpush2.bf16.msra.mxu0 %v527
        %598 = vmatprep.subr.bf16.mxu0 %v526
        %599 = vmatpush2.bf16.msra.mxu0 %v525
        %600 = vmatprep.subr.bf16.mxu0 %v524
        %601 = vmatpush2.bf16.msra.mxu0 %v523
        %602 = vmatprep.subr.bf16.mxu0 %v522
        %603 = vmatpush2.bf16.msra.mxu0 %v521
        %604 = vmatprep.subr.bf16.mxu0 %v520
        %605 = vmatpush2.bf16.msra.mxu0 %v519
        %606 = vmatprep.subr.bf16.mxu0 %v518
        %607 = vmatpush2.bf16.msra.mxu0 %v517
        %608 = vmatprep.mubr.bf16.mxu0 %v371
        %609 = vmatmul.mubr.bf16.gmra.mxu0 %v370
        %v610 = vpop.f32.mrf.mxu0
        %v611 = vadd.f32 %v569, %v610
        %v612 = vpop.f32.mrf.mxu0
        %v613 = vadd.f32 %v573, %v612
        %v614 = vpop.f32.mrf.mxu0
        %v615 = vpop.f32.mrf.mxu0
        %616 = vdwg.mxu0
        %vm617 = vcmp.ge.f32.partialorder %v611, 0.0
        %vm618 = vcmp.ge.f32.partialorder %v613, 0.0
        %v619 = vmul.f32 %v611, 0.2
        %v620 = vmul.f32 %v613, 0.2
        %v621 = vsel %vm617, %v611, %v619
        %v622 = vsel %vm618, %v613, %v620
        %v623 = vpack.c.bf16 %v621, %v621
        %v624 = vpack.c.bf16 %v622, %v622
        %v625 = vld [vmem:[#allocation5] sm:$0xf]
        %v626 = vld [vmem:[#allocation5 + $0x4] sm:$0xf]
        %v627 = vld [vmem:[#allocation5 + $0x8] sm:$0xf]
        %v628 = vld [vmem:[#allocation5 + $0xc] sm:$0xf]
        %v629 = vld [vmem:[#allocation5 + $0x10] sm:$0xf]
        %v630 = vld [vmem:[#allocation5 + $0x14] sm:$0xf]
        %v631 = vld [vmem:[#allocation5 + $0x18] sm:$0xf]
        %v632 = vld [vmem:[#allocation5 + $0x1c] sm:$0xf]
        %v633 = vld [vmem:[#allocation5 + $0x20] sm:$0xf]
        %v634 = vld [vmem:[#allocation5 + $0x24] sm:$0xf]
        %v635 = vld [vmem:[#allocation5 + $0x28] sm:$0xf]
        %v636 = vld [vmem:[#allocation5 + $0x2c] sm:$0xf]
        %v637 = vld [vmem:[#allocation5 + $0x30] sm:$0xf]
        %v638 = vld [vmem:[#allocation5 + $0x34] sm:$0xf]
        %v639 = vld [vmem:[#allocation5 + $0x38] sm:$0xf]
        %v640 = vld [vmem:[#allocation5 + $0x3c] sm:$0xf]
        %v641 = vld [vmem:[#allocation5 + $0x40] sm:$0xf]
        %v642 = vld [vmem:[#allocation5 + $0x44] sm:$0xf]
        %v643 = vld [vmem:[#allocation5 + $0x48] sm:$0xf]
        %v644 = vld [vmem:[#allocation5 + $0x4c] sm:$0xf]
        %v645 = vld [vmem:[#allocation5 + $0x50] sm:$0xf]
        %v646 = vld [vmem:[#allocation5 + $0x54] sm:$0xf]
        %v647 = vld [vmem:[#allocation5 + $0x58] sm:$0xf]
        %v648 = vld [vmem:[#allocation5 + $0x5c] sm:$0xf]
        %v649 = vld [vmem:[#allocation5 + $0x60] sm:$0xf]
        %v650 = vld [vmem:[#allocation5 + $0x64] sm:$0xf]
        %v651 = vld [vmem:[#allocation5 + $0x68] sm:$0xf]
        %v652 = vld [vmem:[#allocation5 + $0x6c] sm:$0xf]
        %v653 = vld [vmem:[#allocation5 + $0x70] sm:$0xf]
        %v654 = vld [vmem:[#allocation5 + $0x74] sm:$0xf]
        %v655 = vld [vmem:[#allocation5 + $0x78] sm:$0xf]
        %v656 = vld [vmem:[#allocation5 + $0x7c] sm:$0xf]
        %v657 = vld [vmem:[%s4] sm:$0x1]
        %v690 = vunpack.c.l.b16 %v625
        %v691 = vunpack.c.l.b16 %v626
        %v692 = vunpack.c.l.b16 %v627
        %v693 = vunpack.c.l.b16 %v628
        %v694 = vunpack.c.l.b16 %v629
        %v695 = vunpack.c.l.b16 %v630
        %v696 = vunpack.c.l.b16 %v631
        %v697 = vunpack.c.l.b16 %v632
        %v698 = vunpack.c.l.b16 %v633
        %v699 = vunpack.c.l.b16 %v634
        %v700 = vunpack.c.l.b16 %v635
        %v701 = vunpack.c.l.b16 %v636
        %v702 = vunpack.c.l.b16 %v637
        %v703 = vunpack.c.l.b16 %v638
        %v704 = vunpack.c.l.b16 %v639
        %v705 = vunpack.c.l.b16 %v640
        %v706 = vunpack.c.l.b16 %v641
        %v707 = vunpack.c.l.b16 %v642
        %v708 = vunpack.c.l.b16 %v643
        %v709 = vunpack.c.l.b16 %v644
        %v710 = vunpack.c.l.b16 %v645
        %v711 = vunpack.c.l.b16 %v646
        %v712 = vunpack.c.l.b16 %v647
        %v713 = vunpack.c.l.b16 %v648
        %v714 = vunpack.c.l.b16 %v649
        %v715 = vunpack.c.l.b16 %v650
        %v716 = vunpack.c.l.b16 %v651
        %v717 = vunpack.c.l.b16 %v652
        %v718 = vunpack.c.l.b16 %v653
        %v719 = vunpack.c.l.b16 %v654
        %v720 = vunpack.c.l.b16 %v655
        %v721 = vunpack.c.l.b16 %v656
        %v722 = vpack.c.b16 %v691, %v690
        %v723 = vpack.c.b16 %v693, %v692
        %v724 = vpack.c.b16 %v695, %v694
        %v725 = vpack.c.b16 %v697, %v696
        %v726 = vpack.c.b16 %v699, %v698
        %v727 = vpack.c.b16 %v701, %v700
        %v728 = vpack.c.b16 %v703, %v702
        %v729 = vpack.c.b16 %v705, %v704
        %v730 = vpack.c.b16 %v707, %v706
        %v731 = vpack.c.b16 %v709, %v708
        %v732 = vpack.c.b16 %v711, %v710
        %v733 = vpack.c.b16 %v713, %v712
        %v734 = vpack.c.b16 %v715, %v714
        %v735 = vpack.c.b16 %v717, %v716
        %v736 = vpack.c.b16 %v719, %v718
        %v737 = vpack.c.b16 %v721, %v720
        %754 = vmatprep.subr.bf16.mxu0 0
        %755 = vmatpush1.bf16.msra.mxu0 %v729
        %756 = vmatprep.subr.bf16.mxu0 0
        %757 = vmatpush1.bf16.msra.mxu0 %v728
        %758 = vmatprep.subr.bf16.mxu0 0
        %759 = vmatpush1.bf16.msra.mxu0 %v727
        %760 = vmatprep.subr.bf16.mxu0 0
        %761 = vmatpush1.bf16.msra.mxu0 %v726
        %762 = vmatprep.subr.bf16.mxu0 0
        %763 = vmatpush1.bf16.msra.mxu0 %v725
        %764 = vmatprep.subr.bf16.mxu0 0
        %765 = vmatpush1.bf16.msra.mxu0 %v724
        %766 = vmatprep.subr.bf16.mxu0 0
        %767 = vmatpush1.bf16.msra.mxu0 %v723
        %768 = vmatprep.subr.bf16.mxu0 0
        %769 = vmatpush1.bf16.msra.mxu0 %v722
        %770 = vmatprep.subr.bf16.mxu0 0
        %771 = vmatpush2.bf16.msra.mxu0 %v737
        %772 = vmatprep.subr.bf16.mxu0 0
        %773 = vmatpush2.bf16.msra.mxu0 %v736
        %774 = vmatprep.subr.bf16.mxu0 0
        %775 = vmatpush2.bf16.msra.mxu0 %v735
        %776 = vmatprep.subr.bf16.mxu0 0
        %777 = vmatpush2.bf16.msra.mxu0 %v734
        %778 = vmatprep.subr.bf16.mxu0 0
        %779 = vmatpush2.bf16.msra.mxu0 %v733
        %780 = vmatprep.subr.bf16.mxu0 0
        %781 = vmatpush2.bf16.msra.mxu0 %v732
        %782 = vmatprep.subr.bf16.mxu0 0
        %783 = vmatpush2.bf16.msra.mxu0 %v731
        %784 = vmatprep.subr.bf16.mxu0 0
        %785 = vmatpush2.bf16.msra.mxu0 %v730
        %786 = vmatprep.mubr.bf16.mxu0 %v624
        %787 = vmatmul.mubr.bf16.gmra.mxu0 %v623
        %v788 = vpop.f32.mrf.mxu0
        %v789 = vadd.f32 %v657, %v788
        %v790 = vpop.f32.mrf.mxu0
        %v791 = vpop.f32.mrf.mxu0
        %v792 = vpop.f32.mrf.mxu0
        %793 = vdwg.mxu0
        %795 = vrot.lane.b32.xlu0 %v789, 96
        %v796 = vpop.permute.xlu0 %795
        %v798 = vmax.f32 %v789, %v796
        %799 = vrot.lane.b32.xlu0 %v789, 64
        %v800 = vpop.permute.xlu0 %799
        %v802 = vmax.f32 %v798, %v800
        %803 = vrot.lane.b32.xlu0 %v789, 32
        %v804 = vpop.permute.xlu0 %803
        %v806 = vmax.f32 %v802, %v804
        %v807 = vpack.c.bf16 %v806, %v806
        %v808 = vld [vmem:[%s5] sm:$0xf]
        %v809 = vld [vmem:[%s5 + $0x4] sm:$0xf]
        %v810 = vld [vmem:[%s5 + $0x8] sm:$0xf]
        %v811 = vld [vmem:[%s5 + $0xc] sm:$0xf]
        %v812 = vld [vmem:[%s6] sm:$0x1]
        %v817 = vunpack.c.l.b16 %v808
        %v818 = vunpack.c.l.b16 %v809
        %v819 = vunpack.c.l.b16 %v810
        %v820 = vunpack.c.l.b16 %v811
        %v821 = vpack.c.b16 %v818, %v817
        %v822 = vpack.c.b16 %v820, %v819
        %vm825 = vcmask 261120
        %v827 = vsel %vm825, %v807, 0
        %829 = vmatprep.subr.bf16.mxu0 0
        %830 = vmatpush1.bf16.msra.mxu0 0
        %831 = vmatprep.subr.bf16.mxu0 0
        %832 = vmatpush1.bf16.msra.mxu0 0
        %833 = vmatprep.subr.bf16.mxu0 0
        %834 = vmatpush1.bf16.msra.mxu0 0
        %835 = vmatprep.subr.bf16.mxu0 0
        %836 = vmatpush1.bf16.msra.mxu0 0
        %837 = vmatprep.subr.bf16.mxu0 0
        %838 = vmatpush1.bf16.msra.mxu0 0
        %839 = vmatprep.subr.bf16.mxu0 0
        %840 = vmatpush1.bf16.msra.mxu0 0
        %841 = vmatprep.subr.bf16.mxu0 0
        %842 = vmatpush1.bf16.msra.mxu0 %v822
        %843 = vmatprep.subr.bf16.mxu0 0
        %844 = vmatpush1.bf16.msra.mxu0 %v821
        %845 = vmatprep.subr.bf16.mxu0 0
        %846 = vmatpush2.bf16.msra.mxu0 0
        %847 = vmatprep.subr.bf16.mxu0 0
        %848 = vmatpush2.bf16.msra.mxu0 0
        %849 = vmatprep.subr.bf16.mxu0 0
        %850 = vmatpush2.bf16.msra.mxu0 0
        %851 = vmatprep.subr.bf16.mxu0 0
        %852 = vmatpush2.bf16.msra.mxu0 0
        %853 = vmatprep.subr.bf16.mxu0 0
        %854 = vmatpush2.bf16.msra.mxu0 0
        %855 = vmatprep.subr.bf16.mxu0 0
        %856 = vmatpush2.bf16.msra.mxu0 0
        %857 = vmatprep.subr.bf16.mxu0 0
        %858 = vmatpush2.bf16.msra.mxu0 0
        %859 = vmatprep.subr.bf16.mxu0 0
        %860 = vmatpush2.bf16.msra.mxu0 0
        %861 = vmatprep.mubr.bf16.mxu0 0
        %862 = vmatmul.mubr.bf16.gmra.mxu0 %v827
        %v863 = vpop.f32.mrf.mxu0
        %v864 = vadd.f32 %v812, %v863
        %v865 = vpop.f32.mrf.mxu0
        %v866 = vpop.f32.mrf.mxu0
        %v867 = vpop.f32.mrf.mxu0
        %868 = vdwg.mxu0
        %v869 = vmax.f32 %v864, 0.0
        %v870 = vpack.c.bf16 %v869, %v869
        %v871 = vld [vmem:[%s7] sm:$0xf]
        %v872 = vld [vmem:[%s7 + $0x4] sm:$0xf]
        %v873 = vld [vmem:[%s7 + $0x8] sm:$0xf]
        %v874 = vld [vmem:[%s7 + $0xc] sm:$0xf]
        %v875 = vld [vmem:[%s7 + $0x10] sm:$0xf]
        %v876 = vld [vmem:[%s7 + $0x14] sm:$0xf]
        %v877 = vld [vmem:[%s7 + $0x18] sm:$0xf]
        %v878 = vld [vmem:[%s7 + $0x1c] sm:$0xf]
        %v879 = vld [vmem:[%s8] sm:$0x1]
        %v888 = vunpack.c.l.b16 %v871
        %v889 = vunpack.c.l.b16 %v872
        %v890 = vunpack.c.l.b16 %v873
        %v891 = vunpack.c.l.b16 %v874
        %v892 = vunpack.c.l.b16 %v875
        %v893 = vunpack.c.l.b16 %v876
        %v894 = vunpack.c.l.b16 %v877
        %v895 = vunpack.c.l.b16 %v878
        %v896 = vpack.c.b16 %v889, %v888
        %v897 = vpack.c.b16 %v891, %v890
        %v898 = vpack.c.b16 %v893, %v892
        %v899 = vpack.c.b16 %v895, %v894
        %vm904 = vcmask 523264
        %v906 = vsel %vm904, %v870, 0
        %908 = vmatprep.subr.bf16.mxu0 0
        %909 = vmatpush1.bf16.msra.mxu0 0
        %910 = vmatprep.subr.bf16.mxu0 0
        %911 = vmatpush1.bf16.msra.mxu0 0
        %912 = vmatprep.subr.bf16.mxu0 0
        %913 = vmatpush1.bf16.msra.mxu0 0
        %914 = vmatprep.subr.bf16.mxu0 0
        %915 = vmatpush1.bf16.msra.mxu0 0
        %916 = vmatprep.subr.bf16.mxu0 0
        %917 = vmatpush1.bf16.msra.mxu0 %v899
        %918 = vmatprep.subr.bf16.mxu0 0
        %919 = vmatpush1.bf16.msra.mxu0 %v898
        %920 = vmatprep.subr.bf16.mxu0 0
        %921 = vmatpush1.bf16.msra.mxu0 %v897
        %922 = vmatprep.subr.bf16.mxu0 0
        %923 = vmatpush1.bf16.msra.mxu0 %v896
        %924 = vmatprep.subr.bf16.mxu0 0
        %925 = vmatpush2.bf16.msra.mxu0 0
        %926 = vmatprep.subr.bf16.mxu0 0
        %927 = vmatpush2.bf16.msra.mxu0 0
        %928 = vmatprep.subr.bf16.mxu0 0
        %929 = vmatpush2.bf16.msra.mxu0 0
        %930 = vmatprep.subr.bf16.mxu0 0
        %931 = vmatpush2.bf16.msra.mxu0 0
        %932 = vmatprep.subr.bf16.mxu0 0
        %933 = vmatpush2.bf16.msra.mxu0 0
        %934 = vmatprep.subr.bf16.mxu0 0
        %935 = vmatpush2.bf16.msra.mxu0 0
        %936 = vmatprep.subr.bf16.mxu0 0
        %937 = vmatpush2.bf16.msra.mxu0 0
        %938 = vmatprep.subr.bf16.mxu0 0
        %939 = vmatpush2.bf16.msra.mxu0 0
        %940 = vmatprep.mubr.bf16.mxu0 0
        %941 = vmatmul.mubr.bf16.gmra.mxu0 %v906
        %v942 = vpop.f32.mrf.mxu0
        %v943 = vadd.f32 %v879, %v942
        %v944 = vpop.f32.mrf.mxu0
        %v945 = vpop.f32.mrf.mxu0
        %v946 = vpop.f32.mrf.mxu0
        %947 = vdwg.mxu0
        %vm948 = vcmask 73728
        %949 = vst.msk [vmem:[%s352] sm:$0x1] %vm948, %v943
        %s950 = sand.u32 %s227, 1
        %s951 = scalar_lea.sflag [#allocation4], %s950
        %s952 = sand.u32 %s227, 1
        %s953 = scalar_lea.vmem [#allocation7], %s952
        // Predicated region
        $region65: #{tpu_custom_call.1} parent=55 // pred_check
          %p954 = pneg %p237
        $region66: #{tpu_custom_call.1} parent=55 // pred_check_branch
          %956 = sbr.rel (%p954) target = $region68
        $region67: #{tpu_custom_call.1} parent=55 // pred_region
          %s958 = ssub.s32 16, 16
          %959 = vsyncadd %s951, %s958
          %s960 = smul.addr %s25, 16
          %s961 = scalar_lea.hbm %s9, %s960
          %s963 = sshll.u32 %s953, 4
          %s964 = int_to_ptr.vmem [resolvable:$true] %s963
          %966 = dma.vmem_to_hbm [thread:$0]  %s964, 16, %s961, %s951
        $region68: #{tpu_custom_call.1} parent=55 // pred_fallthru
          _
      $region56: #{tpu_custom_call.1} parent=5 // pred_fallthru
        _
      %p967 = scmp.le.s32.totalorder 2, %s20
      // Predicated region
      $region69: #{tpu_custom_call.1} parent=5 // pred_check
        %p968 = pneg %p967
      $region70: #{tpu_custom_call.1} parent=5 // pred_check_branch
        %970 = sbr.rel (%p968) target = $region72
      $region71: #{tpu_custom_call.1} parent=5 // pred_region
        %s971 = ssub.s32 %s20, 2
        // Predicated region
        $region73: #{tpu_custom_call.1} parent=71 // pred_check
          %p972 = pneg %p243
        $region74: #{tpu_custom_call.1} parent=71 // pred_check_branch
          %974 = sbr.rel (%p972) target = $region76
        $region75: #{tpu_custom_call.1} parent=71 // pred_region
          %s975 = sand.u32 %s228, 1
          %s976 = scalar_lea.sflag [#allocation4], %s975
          %s977 = sand.u32 %s228, 1
          %s978 = scalar_lea.vmem [#allocation7], %s977
          %979 = dma.done %s976, 16
        $region76: #{tpu_custom_call.1} parent=71 // pred_fallthru
          _
      $region72: #{tpu_custom_call.1} parent=5 // pred_fallthru
        _
    $region6: #{tpu_custom_call.1} parent=1 // loop_footer
      %s24 = sadd.s32 1, %s20
    $region7: #{tpu_custom_call.1} parent=1 // loop_footer_branch
      %19 = sbr.rel target = $region3
    $region8: #{tpu_custom_call.1} parent=1 // loop_exit
      _
    %980 = vsyncpa [#allocation3], 1
    %s981 = scalar_lea.sflag [#allocation3], 1
    %982 = vsyncpa %s981, 1
    %983 = vsyncpa [#allocation6], 1
    %984 = vsyncpa [#allocation4], 1
    %s985 = scalar_lea.sflag [#allocation4], 1
    %986 = vsyncpa %s985, 1

</llo_original>
